<compile_context>
chip_gen: v7x
topology: tpu7x:2x2x1
jax: 0.10.0
libtpu: 0.0.40
codegen_flags: <defaults>
</compile_context>

<pallas_src>
import functools

import numpy as np

import jax
import jax.numpy as jnp
from jax.experimental import pallas as pl
from jax.experimental.pallas import tpu as pltpu


_MAX_PLANES_PER_STEP = 32  # keeps the static per-plane loop (and compile time) short


def _resize_matrix(in_size: int, out_size: int) -> np.ndarray:
    """Interpolation matrix M (out_size, in_size) s.t. y = M @ x is a 1-D bilinear
    resize with PyTorch's align_corners=False semantics (antialias off).
    Built with numpy at trace time -> baked in as a compile-time constant."""
    scale = in_size / out_size
    dst = np.arange(out_size, dtype=np.float64)
    src = (dst + 0.5) * scale - 0.5
    src = np.maximum(src, 0.0)  # PyTorch clamps negative source coords to 0
    idx0 = np.clip(np.floor(src).astype(np.int64), 0, in_size - 1)
    idx1 = np.minimum(idx0 + 1, in_size - 1)
    w1 = src - idx0.astype(np.float64)
    w0 = 1.0 - w1
    m = np.zeros((out_size, in_size), dtype=np.float64)
    rows = np.arange(out_size)
    np.add.at(m, (rows, idx0), w0)
    np.add.at(m, (rows, idx1), w1)
    return m.astype(np.float32)


def _vmem_limit_bytes() -> int:
    """Generation-aware scoped-VMEM limit: ~3/4 of physical VMEM, capped.
    ~96 MiB on v5e/v6e (128 MiB physical), ~48 MiB on v7x (64 MiB physical)."""
    try:
        cap = int(pltpu.get_tpu_info().vmem_capacity_bytes)
    except Exception:
        cap = 64 * 1024 * 1024  # conservative fallback (v7x per-TC physical VMEM)
    return min((cap * 3) // 4, 112 * 1024 * 1024)


def _choose_planes_per_step(nc, h_in, w_in, h_out, w_out, itemsize, budget):
    """Planes (BP) per grid step: largest divisor of nc that fits the VMEM budget,
    preferring grid length >= 2 (and even) so v7x's two TensorCores stay balanced."""

    def vmem_bytes(bp):
        return (2 * bp * h_in * w_in * itemsize            # input block, double-buffered
                + 2 * bp * h_out * w_out * itemsize        # output block, double-buffered
                + 2 * 4 * (h_out * h_in + w_in * w_out)    # f32 weights, double-buffered
                + 2 * 4 * (h_in * w_in + h_out * w_in + h_out * w_out))  # per-plane temps

    feasible = [d for d in range(1, nc + 1)
                if nc % d == 0 and d <= _MAX_PLANES_PER_STEP and vmem_bytes(d) <= budget]
    if not feasible:
        return 1  # TODO(synk): W-tiling needed if even a single plane busts VMEM.

    def rank(d):
        g = nc // d
        return (g >= 2, g >= 2 and g % 2 == 0, d)

    return max(feasible, key=rank)


def _make_resize_kernel(bp, out_dtype):
    """Kernel over one group of BP planes: per-plane separable bilinear resize with
    in-kernel dtype conversion (load-cast to f32, store-cast to the original dtype)."""
    out_dtype = jnp.dtype(out_dtype)
    is_int = jnp.issubdtype(out_dtype, jnp.integer)
    if is_int:
        info = jnp.iinfo(out_dtype)
        lo, hi = float(info.min), float(info.max)

    def kernel(wh_ref, wwt_ref, x_ref, o_ref):
        # wh_ref:  (H_out, H_in)  f32, shared row-interpolation weights
        # wwt_ref: (W_in, W_out)  f32, shared column-interpolation weights (transposed)
        # x_ref:   (BP, H_in, W_in)   original dtype
        # o_ref:   (BP, H_out, W_out) original dtype
        wh = wh_ref[...]
        wwt = wwt_ref[...]
        for p in range(bp):  # static, short loop (bp <= 32); each plane: two dense GEMMs
            xp = x_ref[p].astype(jnp.float32)                          # (H_in, W_in)
            t = jnp.dot(wh, xp, preferred_element_type=jnp.float32)    # (H_out, W_in)
            op = jnp.dot(t, wwt, preferred_element_type=jnp.float32)   # (H_out, W_out)
            if is_int:
                # Round half away from zero (PyTorch-style), then saturate.
                op = jnp.where(op >= 0.0, jnp.floor(op + 0.5), jnp.ceil(op - 0.5))
                op = jnp.clip(op, lo, hi)
            o_ref[p] = op.astype(out_dtype)

    return kernel


@functools.partial(jax.jit, static_argnames=("new_size",))
def pallas_resize(x: jnp.ndarray, new_size=(512, 512)) -> jnp.ndarray:
    """Bilinear (align_corners=False, antialias off) resize of an NCHW tensor."""
    new_size = tuple(int(s) for s in new_size)
    n, c, h_in, w_in = x.shape
    h_out, w_out = new_size
    nc = n * c
    dtype = jnp.dtype(x.dtype)
    itemsize = dtype.itemsize

    vmem_limit = _vmem_limit_bytes()
    bp = _choose_planes_per_step(nc, h_in, w_in, h_out, w_out, itemsize,
                                 budget=vmem_limit - 2 * 1024 * 1024)
    g = nc // bp

    wh = jnp.asarray(_resize_matrix(h_in, h_out))       # (H_out, H_in) f32
    wwt = jnp.asarray(_resize_matrix(w_in, w_out).T)    # (W_in, W_out) f32

    # Contiguous view reshape only — no pad, no transpose, no dtype copy in HBM.
    x_flat = x.reshape(nc, h_in, w_in)

    flops = 2 * nc * (h_out * h_in * w_in + h_out * w_in * w_out)
    bytes_accessed = (nc * (h_in * w_in + h_out * w_out) * itemsize
                      + 4 * (h_out * h_in + w_in * w_out))

    out_flat = pl.pallas_call(
        _make_resize_kernel(bp, dtype),
        out_shape=jax.ShapeDtypeStruct((nc, h_out, w_out), dtype),
        grid=(g,),
        in_specs=[
            pl.BlockSpec((h_out, h_in), lambda i: (0, 0)),       # fetched once (constant)
            pl.BlockSpec((w_in, w_out), lambda i: (0, 0)),       # fetched once (constant)
            pl.BlockSpec((bp, h_in, w_in), lambda i: (i, 0, 0)),
        ],
        out_specs=pl.BlockSpec((bp, h_out, w_out), lambda i: (i, 0, 0)),
        compiler_params=pltpu.CompilerParams(
            dimension_semantics=("parallel",),
            vmem_limit_bytes=vmem_limit,
        ),
        cost_estimate=pl.CostEstimate(flops=flops, transcendentals=0,
                                      bytes_accessed=bytes_accessed),
    )(wh, wwt, x_flat)

    return out_flat.reshape(n, c, h_out, w_out)


class Resize:
    """JAX/Pallas equivalent of the PyTorch `Resize` module."""

    def __init__(self, new_size=(512, 512)):
        self.new_size = tuple(int(s) for s in new_size)

    def __call__(self, image, mask=None):
        if mask is None:
            return (pallas_resize(image, new_size=self.new_size), None)
        # Fuse the mask into the same kernel launch when layouts match: identical
        # interpolation matrices, and a separate tiny launch would be overhead-dominated.
        if (mask.ndim == 4 and mask.dtype == image.dtype
                and mask.shape[0] == image.shape[0]
                and mask.shape[2:] == image.shape[2:]):
            c_img = image.shape[1]
            fused = jnp.concatenate([image, mask], axis=1)
            out = pallas_resize(fused, new_size=self.new_size)
            return (out[:, :c_img], out[:, c_img:])
        return (pallas_resize(image, new_size=self.new_size),
                pallas_resize(mask, new_size=self.new_size))


def _reference_resize(x, new_size):
    """Pure-JAX reference (same separable bilinear formulation)."""
    h_in, w_in = x.shape[2], x.shape[3]
    h_out, w_out = new_size
    wh = jnp.asarray(_resize_matrix(h_in, h_out))
    ww = jnp.asarray(_resize_matrix(w_in, w_out))
    return jnp.einsum("oh,nchw,pw->ncop", wh, x.astype(jnp.float32), ww).astype(x.dtype)


if __name__ == "__main__":
    key = jax.random.PRNGKey(0)
    k_img, k_msk = jax.random.split(key)

    # Small shapes consistent with the module's forward: NCHW image + 1-channel mask.
    image = jax.random.normal(k_img, (2, 4, 16, 16), dtype=jnp.float32)
    mask = jax.random.uniform(k_msk, (2, 1, 16, 16), dtype=jnp.float32)

    new_size = (32, 32)
    resize = Resize(new_size)
    out_image, out_mask = resize(image, mask)
    out_image = jax.block_until_ready(out_image)
    out_mask = jax.block_until_ready(out_mask)

    assert out_image.shape == (2, 4, 32, 32)
    assert out_mask.shape == (2, 1, 32, 32)

    ref_image = _reference_resize(image, new_size)
    ref_mask = _reference_resize(mask, new_size)
    assert jnp.allclose(out_image, ref_image, atol=1e-5, rtol=1e-5)
    assert jnp.allclose(out_mask, ref_mask, atol=1e-5, rtol=1e-5)

    # Downscale path (antialias off), image only.
    small = jax.block_until_ready(pallas_resize(image, new_size=(8, 8)))
    assert small.shape == (2, 4, 8, 8)
    assert jnp.allclose(small, _reference_resize(image, (8, 8)), atol=1e-5, rtol=1e-5)

    print("KERNEL_OK")
</pallas_src>

<mosaic_0001>
module attributes {stable_mosaic.version = 11 : i64} {
  func.func @kernel(%arg0: i32, %arg1: memref<32x16xf32, #tpu.memory_space<vmem>>, %arg2: memref<16x32xf32, #tpu.memory_space<vmem>>, %arg3: memref<5x16x16xf32, #tpu.memory_space<vmem>>, %arg4: memref<5x32x32xf32, #tpu.memory_space<vmem>>) attributes {dimension_semantics = [#tpu.dimension_semantics<parallel>], iteration_bounds = array<i64: 2>, scalar_prefetch = 0 : i64, scratch_operands = 0 : i64, tpu.core_type = #tpu.core_type<tc>, window_params = [{pipeline_mode = #tpu.pipeline_mode<synchronous>, transform_indices = @transform_0, window_bounds = array<i64: 32, 16>}, {pipeline_mode = #tpu.pipeline_mode<synchronous>, transform_indices = @transform_1, window_bounds = array<i64: 16, 32>}, {transform_indices = @transform_2, window_bounds = array<i64: 5, 16, 16>}, {transform_indices = @transform_3, window_bounds = array<i64: 5, 32, 32>}]} {
    %c0 = arith.constant 0 : index
    %c0_0 = arith.constant 0 : index
    %0 = vector.load %arg1[%c0, %c0_0] : memref<32x16xf32, #tpu.memory_space<vmem>>, vector<32x16xf32>
    %c0_1 = arith.constant 0 : index
    %c0_2 = arith.constant 0 : index
    %1 = vector.load %arg2[%c0_1, %c0_2] : memref<16x32xf32, #tpu.memory_space<vmem>>, vector<16x32xf32>
    %c0_3 = arith.constant 0 : index
    %c0_4 = arith.constant 0 : index
    %c0_5 = arith.constant 0 : index
    %2 = vector.load %arg3[%c0_3, %c0_4, %c0_5] : memref<5x16x16xf32, #tpu.memory_space<vmem>>, vector<1x16x16xf32>
    %3 = vector.shape_cast %2 : vector<1x16x16xf32> to vector<16x16xf32>
    %cst = arith.constant dense<0.000000e+00> : vector<32x16xf32>
    %4 = tpu.matmul %0, %3, %cst {dimension_numbers = #tpu.dot_dimension_numbers<[1], [0], [0], [1], [0, 0, 1, 1], [], []>} : vector<32x16xf32>, vector<16x16xf32>, vector<32x16xf32> -> vector<32x16xf32>
    %cst_6 = arith.constant dense<0.000000e+00> : vector<32x32xf32>
    %5 = tpu.matmul %4, %1, %cst_6 {dimension_numbers = #tpu.dot_dimension_numbers<[1], [0], [0], [1], [0, 0, 1, 1], [], []>} : vector<32x16xf32>, vector<16x32xf32>, vector<32x32xf32> -> vector<32x32xf32>
    %c0_7 = arith.constant 0 : index
    %c0_8 = arith.constant 0 : index
    %c0_9 = arith.constant 0 : index
    %6 = vector.load %arg4[%c0_7, %c0_8, %c0_9] : memref<5x32x32xf32, #tpu.memory_space<vmem>>, vector<1x32x32xf32>
    %7 = vector.shape_cast %6 : vector<1x32x32xf32> to vector<32x32xf32>
    %8 = vector.shape_cast %5 : vector<32x32xf32> to vector<1x32x32xf32>
    tpu.vector_store %arg4[%c0_7, %c0_8, %c0_9], %8 {strides = array<i32>} : memref<5x32x32xf32, #tpu.memory_space<vmem>>, vector<1x32x32xf32>,
    %c1 = arith.constant 1 : index
    %c0_10 = arith.constant 0 : index
    %c0_11 = arith.constant 0 : index
    %9 = vector.load %arg3[%c1, %c0_10, %c0_11] : memref<5x16x16xf32, #tpu.memory_space<vmem>>, vector<1x16x16xf32>
    %10 = vector.shape_cast %9 : vector<1x16x16xf32> to vector<16x16xf32>
    %cst_12 = arith.constant dense<0.000000e+00> : vector<32x16xf32>
    %11 = tpu.matmul %0, %10, %cst_12 {dimension_numbers = #tpu.dot_dimension_numbers<[1], [0], [0], [1], [0, 0, 1, 1], [], []>} : vector<32x16xf32>, vector<16x16xf32>, vector<32x16xf32> -> vector<32x16xf32>
    %cst_13 = arith.constant dense<0.000000e+00> : vector<32x32xf32>
    %12 = tpu.matmul %11, %1, %cst_13 {dimension_numbers = #tpu.dot_dimension_numbers<[1], [0], [0], [1], [0, 0, 1, 1], [], []>} : vector<32x16xf32>, vector<16x32xf32>, vector<32x32xf32> -> vector<32x32xf32>
    %c1_14 = arith.constant 1 : index
    %c0_15 = arith.constant 0 : index
    %c0_16 = arith.constant 0 : index
    %13 = vector.load %arg4[%c1_14, %c0_15, %c0_16] : memref<5x32x32xf32, #tpu.memory_space<vmem>>, vector<1x32x32xf32>
    %14 = vector.shape_cast %13 : vector<1x32x32xf32> to vector<32x32xf32>
    %15 = vector.shape_cast %12 : vector<32x32xf32> to vector<1x32x32xf32>
    tpu.vector_store %arg4[%c1_14, %c0_15, %c0_16], %15 {strides = array<i32>} : memref<5x32x32xf32, #tpu.memory_space<vmem>>, vector<1x32x32xf32>,
    %c2 = arith.constant 2 : index
    %c0_17 = arith.constant 0 : index
    %c0_18 = arith.constant 0 : index
    %16 = vector.load %arg3[%c2, %c0_17, %c0_18] : memref<5x16x16xf32, #tpu.memory_space<vmem>>, vector<1x16x16xf32>
    %17 = vector.shape_cast %16 : vector<1x16x16xf32> to vector<16x16xf32>
    %cst_19 = arith.constant dense<0.000000e+00> : vector<32x16xf32>
    %18 = tpu.matmul %0, %17, %cst_19 {dimension_numbers = #tpu.dot_dimension_numbers<[1], [0], [0], [1], [0, 0, 1, 1], [], []>} : vector<32x16xf32>, vector<16x16xf32>, vector<32x16xf32> -> vector<32x16xf32>
    %cst_20 = arith.constant dense<0.000000e+00> : vector<32x32xf32>
    %19 = tpu.matmul %18, %1, %cst_20 {dimension_numbers = #tpu.dot_dimension_numbers<[1], [0], [0], [1], [0, 0, 1, 1], [], []>} : vector<32x16xf32>, vector<16x32xf32>, vector<32x32xf32> -> vector<32x32xf32>
    %c2_21 = arith.constant 2 : index
    %c0_22 = arith.constant 0 : index
    %c0_23 = arith.constant 0 : index
    %20 = vector.load %arg4[%c2_21, %c0_22, %c0_23] : memref<5x32x32xf32, #tpu.memory_space<vmem>>, vector<1x32x32xf32>
    %21 = vector.shape_cast %20 : vector<1x32x32xf32> to vector<32x32xf32>
    %22 = vector.shape_cast %19 : vector<32x32xf32> to vector<1x32x32xf32>
    tpu.vector_store %arg4[%c2_21, %c0_22, %c0_23], %22 {strides = array<i32>} : memref<5x32x32xf32, #tpu.memory_space<vmem>>, vector<1x32x32xf32>,
    %c3 = arith.constant 3 : index
    %c0_24 = arith.constant 0 : index
    %c0_25 = arith.constant 0 : index
    %23 = vector.load %arg3[%c3, %c0_24, %c0_25] : memref<5x16x16xf32, #tpu.memory_space<vmem>>, vector<1x16x16xf32>
    %24 = vector.shape_cast %23 : vector<1x16x16xf32> to vector<16x16xf32>
    %cst_26 = arith.constant dense<0.000000e+00> : vector<32x16xf32>
    %25 = tpu.matmul %0, %24, %cst_26 {dimension_numbers = #tpu.dot_dimension_numbers<[1], [0], [0], [1], [0, 0, 1, 1], [], []>} : vector<32x16xf32>, vector<16x16xf32>, vector<32x16xf32> -> vector<32x16xf32>
    %cst_27 = arith.constant dense<0.000000e+00> : vector<32x32xf32>
    %26 = tpu.matmul %25, %1, %cst_27 {dimension_numbers = #tpu.dot_dimension_numbers<[1], [0], [0], [1], [0, 0, 1, 1], [], []>} : vector<32x16xf32>, vector<16x32xf32>, vector<32x32xf32> -> vector<32x32xf32>
    %c3_28 = arith.constant 3 : index
    %c0_29 = arith.constant 0 : index
    %c0_30 = arith.constant 0 : index
    %27 = vector.load %arg4[%c3_28, %c0_29, %c0_30] : memref<5x32x32xf32, #tpu.memory_space<vmem>>, vector<1x32x32xf32>
    %28 = vector.shape_cast %27 : vector<1x32x32xf32> to vector<32x32xf32>
    %29 = vector.shape_cast %26 : vector<32x32xf32> to vector<1x32x32xf32>
    tpu.vector_store %arg4[%c3_28, %c0_29, %c0_30], %29 {strides = array<i32>} : memref<5x32x32xf32, #tpu.memory_space<vmem>>, vector<1x32x32xf32>,
    %c4 = arith.constant 4 : index
    %c0_31 = arith.constant 0 : index
    %c0_32 = arith.constant 0 : index
    %30 = vector.load %arg3[%c4, %c0_31, %c0_32] : memref<5x16x16xf32, #tpu.memory_space<vmem>>, vector<1x16x16xf32>
    %31 = vector.shape_cast %30 : vector<1x16x16xf32> to vector<16x16xf32>
    %cst_33 = arith.constant dense<0.000000e+00> : vector<32x16xf32>
    %32 = tpu.matmul %0, %31, %cst_33 {dimension_numbers = #tpu.dot_dimension_numbers<[1], [0], [0], [1], [0, 0, 1, 1], [], []>} : vector<32x16xf32>, vector<16x16xf32>, vector<32x16xf32> -> vector<32x16xf32>
    %cst_34 = arith.constant dense<0.000000e+00> : vector<32x32xf32>
    %33 = tpu.matmul %32, %1, %cst_34 {dimension_numbers = #tpu.dot_dimension_numbers<[1], [0], [0], [1], [0, 0, 1, 1], [], []>} : vector<32x16xf32>, vector<16x32xf32>, vector<32x32xf32> -> vector<32x32xf32>
    %c4_35 = arith.constant 4 : index
    %c0_36 = arith.constant 0 : index
    %c0_37 = arith.constant 0 : index
    %34 = vector.load %arg4[%c4_35, %c0_36, %c0_37] : memref<5x32x32xf32, #tpu.memory_space<vmem>>, vector<1x32x32xf32>
    %35 = vector.shape_cast %34 : vector<1x32x32xf32> to vector<32x32xf32>
    %36 = vector.shape_cast %33 : vector<32x32xf32> to vector<1x32x32xf32>
    tpu.vector_store %arg4[%c4_35, %c0_36, %c0_37], %36 {strides = array<i32>} : memref<5x32x32xf32, #tpu.memory_space<vmem>>, vector<1x32x32xf32>,
    return
  }
  func.func @transform_0(%arg0: i32) -> (i32, i32) {
    %c0_i32 = arith.constant 0 : i32
    %c0_i32_0 = arith.constant 0 : i32
    %c0_i32_1 = arith.constant 0 : i32
    return %c0_i32, %c0_i32_0 : i32, i32
  }
  func.func @transform_1(%arg0: i32) -> (i32, i32) {
    %c0_i32 = arith.constant 0 : i32
    %c0_i32_0 = arith.constant 0 : i32
    %c0_i32_1 = arith.constant 0 : i32
    return %c0_i32, %c0_i32_0 : i32, i32
  }
  func.func @transform_2(%arg0: i32) -> (i32, i32, i32) {
    %c0_i32 = arith.constant 0 : i32
    %c0_i32_0 = arith.constant 0 : i32
    %c0_i32_1 = arith.constant 0 : i32
    return %arg0, %c0_i32, %c0_i32_0 : i32, i32, i32
  }
  func.func @transform_3(%arg0: i32) -> (i32, i32, i32) {
    %c0_i32 = arith.constant 0 : i32
    %c0_i32_0 = arith.constant 0 : i32
    %c0_i32_1 = arith.constant 0 : i32
    return %arg0, %c0_i32, %c0_i32_0 : i32, i32, i32
  }
}

</mosaic_0001>

<llo_original>
// kernel: pallas_resize.1
$region0: #{pallas_resize.1}
  #allocation0 [shape = 'u32[]', space=smem, size = 0x4, offset = 0x4, fixed_abs, tag = 'smem constant byte address 0x4 - core index']
  #allocation1 [shape = 'u32[144,128]{1,0:T(1,128)}', space=vmem, size = 0x12000, scoped, tag = 'internal scratch']
  %s0 = inlined_call_operand.hbm [shape: f32[32,16], index: 0, kind: input, shape index: {}]
  %s1 = inlined_call_operand.hbm [shape: f32[16,32], index: 1, kind: input, shape index: {}]
  %s2 = inlined_call_operand.hbm [shape: f32[10,16,16], index: 2, kind: input, shape index: {}]
  %s3 = inlined_call_operand.hbm [shape: f32[10,32,32], index: 3, kind: output, shape index: {}]
  %s4 = sld [smem:[#allocation0]]
  $region57: #{pallas_resize.1} parent=0
    _
  %s6 = ssub.s32 1, %s4
  %s7 = scalar_select 0, %s6, %s4
  $region1: #{pallas_resize.1} parent=0
    #allocation2 [shape = 'u8[16384]{0}', space=vmem, size = 0x4000, scoped, tag = 'input window, operand 0, single buffered']
    #allocation3 [shape = 's32[2]{0}', space=sflag, size = 0x8, scoped, tag = 'scoped memory for pallas_resize.1']
    #allocation4 [shape = 's32[2]{0}', space=sflag, size = 0x8, scoped, tag = 'scoped memory for pallas_resize.1']
    #allocation5 [shape = 'u8[8192]{0}', space=vmem, size = 0x2000, scoped, tag = 'input window, operand 1, single buffered']
    #allocation6 [shape = 's32[1]{0}', space=sflag, size = 0x4, scoped, tag = 'scoped memory for pallas_resize.1']
    #allocation7 [shape = 'u8[81920]{0}', space=vmem, size = 0x14000, scoped, tag = 'input window, operand 2']
    #allocation8 [shape = 'u8[163840]{0}', space=vmem, size = 0x28000, scoped, tag = 'output window, operand 0']
    %8 = vsyncpa [#allocation3], 0
    %9 = vsyncpa [#allocation6], 0
    %10 = vsyncpa [#allocation4], 0
    %s11 = scalar_lea.sflag [#allocation4], 1
    %12 = vsyncpa %s11, 0
    loop: start=0, step=1, limit=4
    $region2: #{pallas_resize.1} parent=1 // loop_pre_header
      _
    $region3: #{pallas_resize.1} parent=1 // loop_header
      %s14 = sphi 0, %s18
      %p15 = scmp.ge.s32.totalorder %s14, 4
      %s22 = sphi 0, %s22
      %s24 = sphi 0, %s22
      %s25 = sphi 0, %s24
      %s39 = sphi 0, %s25
      %s43 = sphi 0, %s43
      %s45 = sphi 0, %s43
      %s46 = sphi 0, %s45
      %s60 = sphi 0, %s46
      %s66 = sphi 0, %s68
      %s69 = sphi 0, %s66
      %s70 = sphi 0, %s69
      %s86 = sphi 0, %s70
      %s92 = sphi 0, %s94
      %s95 = sphi 0, %s92
      %s96 = sphi 0, %s95
      %s112 = sphi 0, %s96
    $region4: #{pallas_resize.1} parent=1 // loop_header_branch
      %17 = sbr.rel (%p15) target = $region8
    $region5: #{pallas_resize.1} parent=1 // loop_body
      %s19 = ssub.s32 %s14, 1
      %s20 = ssub.s32 %s14, 2
      %s21 = sadd.s32 %s14, 1
      %s23 = sadd.s32 %s22, 1
      %p26 = scmp.eq.s32.totalorder %s14, 1
      %p27 = scmp.ne.s32.totalorder %s22, %s24
      %p28 = scmp.eq.s32.totalorder %s14, 0
      %p29 = por %p27, %p28
      %p30 = scmp.ne.s32.totalorder %s22, %s24
      %p31 = scmp.eq.s32.totalorder %s19, 1
      %p32 = por %p30, %p31
      %p33 = scmp.ne.s32.totalorder %s24, %s25
      %p34 = scmp.eq.s32.totalorder %s19, 0
      %p35 = por %p33, %p34
      %p36 = scmp.ne.s32.totalorder %s24, %s25
      %p37 = scmp.eq.s32.totalorder %s20, 1
      %p38 = por %p36, %p37
      %p40 = scmp.ne.s32.totalorder %s25, %s39
      %p41 = scmp.eq.s32.totalorder %s20, 0
      %p42 = por %p40, %p41
      %s44 = sadd.s32 %s43, 1
      %p47 = scmp.eq.s32.totalorder %s14, 1
      %p48 = scmp.ne.s32.totalorder %s43, %s45
      %p49 = scmp.eq.s32.totalorder %s14, 0
      %p50 = por %p48, %p49
      %p51 = scmp.ne.s32.totalorder %s43, %s45
      %p52 = scmp.eq.s32.totalorder %s19, 1
      %p53 = por %p51, %p52
      %p54 = scmp.ne.s32.totalorder %s45, %s46
      %p55 = scmp.eq.s32.totalorder %s19, 0
      %p56 = por %p54, %p55
      %p57 = scmp.ne.s32.totalorder %s45, %s46
      %p58 = scmp.eq.s32.totalorder %s20, 1
      %p59 = por %p57, %p58
      %p61 = scmp.ne.s32.totalorder %s46, %s60
      %p62 = scmp.eq.s32.totalorder %s20, 0
      %p63 = por %p61, %p62
      %s64 = ssub.s32 %s14, %s21
      %p65 = scmp.eq.s32.totalorder %s64, 0
      %s67 = sadd.s32 %s66, 1
      %s68 = scalar_select %p65, %s66, %s67
      %p71 = pneg %p65
      %p72 = scmp.eq.s32.totalorder %s14, 1
      %p73 = por %p71, %p72
      %p74 = scmp.ne.s32.totalorder %s66, %s69
      %p75 = scmp.eq.s32.totalorder %s14, 0
      %p76 = por %p74, %p75
      %p77 = scmp.ne.s32.totalorder %s66, %s69
      %p78 = scmp.eq.s32.totalorder %s19, 1
      %p79 = por %p77, %p78
      %p80 = scmp.ne.s32.totalorder %s69, %s70
      %p81 = scmp.eq.s32.totalorder %s19, 0
      %p82 = por %p80, %p81
      %p83 = scmp.ne.s32.totalorder %s69, %s70
      %p84 = scmp.eq.s32.totalorder %s20, 1
      %p85 = por %p83, %p84
      %p87 = scmp.ne.s32.totalorder %s70, %s86
      %p88 = scmp.eq.s32.totalorder %s20, 0
      %p89 = por %p87, %p88
      %s90 = ssub.s32 %s14, %s21
      %p91 = scmp.eq.s32.totalorder %s90, 0
      %s93 = sadd.s32 %s92, 1
      %s94 = scalar_select %p91, %s92, %s93
      %p97 = pneg %p91
      %p98 = scmp.eq.s32.totalorder %s14, 1
      %p99 = por %p97, %p98
      %p100 = scmp.ne.s32.totalorder %s92, %s95
      %p101 = scmp.eq.s32.totalorder %s14, 0
      %p102 = por %p100, %p101
      %p103 = scmp.ne.s32.totalorder %s92, %s95
      %p104 = scmp.eq.s32.totalorder %s19, 1
      %p105 = por %p103, %p104
      %p106 = scmp.ne.s32.totalorder %s95, %s96
      %p107 = scmp.eq.s32.totalorder %s19, 0
      %p108 = por %p106, %p107
      %p109 = scmp.ne.s32.totalorder %s95, %s96
      %p110 = scmp.eq.s32.totalorder %s20, 1
      %p111 = por %p109, %p110
      %p113 = scmp.ne.s32.totalorder %s96, %s112
      %p114 = scmp.eq.s32.totalorder %s20, 0
      %p115 = por %p113, %p114
      %p116 = scmp.le.s32.totalorder 1, %s14
      %p117 = scmp.lt.s32.totalorder %s14, 3
      %p118 = pnand %p116, %p117
      %p119 = pneg %p118
      // Predicated region
      $region9: #{pallas_resize.1} parent=5 // pred_check
        _
      $region10: #{pallas_resize.1} parent=5 // pred_check_branch
        %121 = sbr.rel (%p118) target = $region12
      $region11: #{pallas_resize.1} parent=5 // pred_region
        %s122 = ssub.s32 %s14, 1
        // Predicated region
        $region13: #{pallas_resize.1} parent=11 // pred_check
          %p123 = pneg %p35
        $region14: #{pallas_resize.1} parent=11 // pred_check_branch
          %125 = sbr.rel (%p123) target = $region16
        $region15: #{pallas_resize.1} parent=11 // pred_region
          %s127 = ssub.s32 512, 512
          %128 = vsyncadd [#allocation3], %s127
          %s129 = sshll.u32 [#allocation2], 4
          %s130 = int_to_ptr.vmem [resolvable:$true] %s129
          %135 = dma.hbm_to_vmem [thread:$0]  %s0, 512, %s130, [#allocation3], 128, 128, 8
        $region16: #{pallas_resize.1} parent=11 // pred_fallthru
          _
        // Predicated region
        $region17: #{pallas_resize.1} parent=11 // pred_check
          %p136 = pneg %p56
        $region18: #{pallas_resize.1} parent=11 // pred_check_branch
          %138 = sbr.rel (%p136) target = $region20
        $region19: #{pallas_resize.1} parent=11 // pred_region
          %s140 = ssub.s32 256, 256
          %141 = vsyncadd [#allocation6], %s140
          %s142 = sshll.u32 [#allocation5], 4
          %s143 = int_to_ptr.vmem [resolvable:$true] %s142
          %148 = dma.hbm_to_vmem [thread:$0]  %s1, 256, %s143, [#allocation6], 128, 128, 8
        $region20: #{pallas_resize.1} parent=11 // pred_fallthru
          _
      $region12: #{pallas_resize.1} parent=5 // pred_fallthru
        _
      %p149 = scmp.lt.s32.totalorder %s14, 2
      // Predicated region
      $region21: #{pallas_resize.1} parent=5 // pred_check
        %p150 = pneg %p149
      $region22: #{pallas_resize.1} parent=5 // pred_check_branch
        %152 = sbr.rel (%p150) target = $region24
      $region23: #{pallas_resize.1} parent=5 // pred_region
        // Predicated region
        $region25: #{pallas_resize.1} parent=23 // pred_check
          %p153 = pneg %p76
        $region26: #{pallas_resize.1} parent=23 // pred_check_branch
          %155 = sbr.rel (%p153) target = $region28
        $region27: #{pallas_resize.1} parent=23 // pred_region
          %s156 = sand.u32 %s14, 1
          %s157 = scalar_lea.sflag [#allocation3], %s156
          %s158 = sand.u32 %s66, 1
          %s159 = smul.addr %s158, 80
          %s160 = scalar_lea.vmem [#allocation7], %s159
          %s161 = smul.u32 5, %s14
          %s163 = ssub.s32 1280, 1280
          %164 = vsyncadd %s157, %s163
          %s165 = smul.addr %s161, 2
          %s166 = smul.addr %s165, 128
          %s167 = scalar_lea.hbm %s2, %s166
          %s168 = sshll.u32 %s160, 4
          %s169 = int_to_ptr.vmem [resolvable:$true] %s168
          %174 = dma.hbm_to_vmem [thread:$0]  %s167, 1280, %s169, %s157, 128, 128, 8
        $region28: #{pallas_resize.1} parent=23 // pred_fallthru
          _
      $region24: #{pallas_resize.1} parent=5 // pred_fallthru
        _
      %p175 = scmp.le.s32.totalorder 1, %s14
      %p176 = scmp.lt.s32.totalorder %s14, 3
      %p177 = pnand %p175, %p176
      %p178 = pneg %p177
      // Predicated region
      $region29: #{pallas_resize.1} parent=5 // pred_check
        _
      $region30: #{pallas_resize.1} parent=5 // pred_check_branch
        %180 = sbr.rel (%p177) target = $region32
      $region31: #{pallas_resize.1} parent=5 // pred_region
        %s181 = ssub.s32 %s14, 1
        // Predicated region
        $region33: #{pallas_resize.1} parent=31 // pred_check
          %p182 = pneg %p35
        $region34: #{pallas_resize.1} parent=31 // pred_check_branch
          %184 = sbr.rel (%p182) target = $region36
        $region35: #{pallas_resize.1} parent=31 // pred_region
          %185 = dma.done [#allocation3], 512
        $region36: #{pallas_resize.1} parent=31 // pred_fallthru
          _
        // Predicated region
        $region37: #{pallas_resize.1} parent=31 // pred_check
          %p186 = pneg %p56
        $region38: #{pallas_resize.1} parent=31 // pred_check_branch
          %188 = sbr.rel (%p186) target = $region40
        $region39: #{pallas_resize.1} parent=31 // pred_region
          %189 = dma.done [#allocation6], 256
        $region40: #{pallas_resize.1} parent=31 // pred_fallthru
          _
        %s190 = sand.u32 %s19, 1
        %s191 = scalar_lea.sflag [#allocation3], %s190
        %s192 = sand.u32 %s69, 1
        %s193 = smul.addr %s192, 80
        %s194 = scalar_lea.vmem [#allocation7], %s193
        // Predicated region
        $region41: #{pallas_resize.1} parent=31 // pred_check
          %p195 = pneg %p82
        $region42: #{pallas_resize.1} parent=31 // pred_check_branch
          %197 = sbr.rel (%p195) target = $region44
        $region43: #{pallas_resize.1} parent=31 // pred_region
          %198 = dma.done %s191, 1280
        $region44: #{pallas_resize.1} parent=31 // pred_fallthru
          _
        %p199 = pneg %p35
        %p200 = pneg %p32
        %p201 = pneg %p56
        %p202 = pneg %p53
        %s203 = sand.u32 %s19, 1
        %s204 = scalar_lea.sflag [#allocation3], %s203
        %s205 = sand.u32 %s69, 1
        %s206 = smul.addr %s205, 80
        %s207 = scalar_lea.vmem [#allocation7], %s206
        %p208 = pneg %p82
        %p209 = pneg %p79
        %p210 = pneg %p108
        %p211 = pneg %p105
        %s212 = sand.u32 %s95, 1
        %s213 = scalar_lea.sflag [#allocation4], %s212
        %s214 = sand.u32 %s95, 1
        %s215 = smul.addr %s214, 160
        %s216 = scalar_lea.vmem [#allocation8], %s215
        %s217 = smul.u32 5, %s19
        %s218 = smul.u32 5, %s19
        %v219 = vld [vmem:[#allocation2] sm:$0xff]
        %v220 = vld [vmem:[#allocation2 + $0x8] sm:$0xff]
        %v221 = vld [vmem:[#allocation2 + $0x10] sm:$0xff]
        %v222 = vld [vmem:[#allocation2 + $0x18] sm:$0xff]
        %v223 = vld [vmem:[#allocation5] sm:$0xff]
        %v224 = vld [vmem:[#allocation5 + $0x8] sm:$0xff]
        %v225 = vld [vmem:[%s194] sm:$0xff]
        %v226 = vld [vmem:[%s194 + $0x8] sm:$0xff]
        %vm227 = vcmask 130048
        %v229 = vsel %vm227, %v219, 0
        %v232 = vsel %vm227, %v220, 0
        %v235 = vsel %vm227, %v221, 0
        %v238 = vsel %vm227, %v222, 0
        %240 = vmatprep.subr.mxu0 0.0
        %241 = vmatpush1.msra.mxu0 %v225
        %242 = vmatprep.subr.mxu0 0.0
        %243 = vmatpush1.msra.mxu0 %v226
        %244 = vmatprep.subr.mxu0 0.0
        %245 = vmatpush1.msra.mxu0 0.0
        %246 = vmatprep.subr.mxu0 0.0
        %247 = vmatpush1.msra.mxu0 0.0
        %248 = vmatprep.subr.mxu0 0.0
        %249 = vmatpush1.msra.mxu0 0.0
        %250 = vmatprep.subr.mxu0 0.0
        %251 = vmatpush1.msra.mxu0 0.0
        %252 = vmatprep.subr.mxu0 0.0
        %253 = vmatpush1.msra.mxu0 0.0
        %254 = vmatprep.subr.mxu0 0.0
        %255 = vmatpush1.msra.mxu0 0.0
        %256 = vmatprep.subr.mxu0 0.0
        %257 = vmatpush1.msra.mxu0 0.0
        %258 = vmatprep.subr.mxu0 0.0
        %259 = vmatpush1.msra.mxu0 0.0
        %260 = vmatprep.subr.mxu0 0.0
        %261 = vmatpush1.msra.mxu0 0.0
        %262 = vmatprep.subr.mxu0 0.0
        %263 = vmatpush1.msra.mxu0 0.0
        %264 = vmatprep.subr.mxu0 0.0
        %265 = vmatpush1.msra.mxu0 0.0
        %266 = vmatprep.subr.mxu0 0.0
        %267 = vmatpush1.msra.mxu0 0.0
        %268 = vmatprep.subr.mxu0 0.0
        %269 = vmatpush1.msra.mxu0 0.0
        %270 = vmatprep.subr.mxu0 0.0
        %271 = vmatpush1.msra.mxu0 0.0
        %272 = vmatprep.subr.mxu0 0.0
        %273 = vmatpush1.msra.mxu0 0.0
        %274 = vmatprep.subr.mxu0 0.0
        %275 = vmatpush1.msra.mxu0 0.0
        %276 = vmatprep.subr.mxu0 0.0
        %277 = vmatpush1.msra.mxu0 0.0
        %278 = vmatprep.subr.mxu0 0.0
        %279 = vmatpush1.msra.mxu0 0.0
        %280 = vmatprep.subr.mxu0 0.0
        %281 = vmatpush1.msra.mxu0 0.0
        %282 = vmatprep.subr.mxu0 0.0
        %283 = vmatpush1.msra.mxu0 0.0
        %284 = vmatprep.subr.mxu0 0.0
        %285 = vmatpush1.msra.mxu0 0.0
        %286 = vmatprep.subr.mxu0 0.0
        %287 = vmatpush1.msra.mxu0 0.0
        %288 = vmatprep.subr.mxu0 0.0
        %289 = vmatpush1.msra.mxu0 0.0
        %290 = vmatprep.subr.mxu0 0.0
        %291 = vmatpush1.msra.mxu0 0.0
        %292 = vmatprep.subr.mxu0 0.0
        %293 = vmatpush1.msra.mxu0 0.0
        %294 = vmatprep.subr.mxu0 0.0
        %295 = vmatpush1.msra.mxu0 0.0
        %296 = vmatprep.subr.mxu0 0.0
        %297 = vmatpush1.msra.mxu0 0.0
        %298 = vmatprep.subr.mxu0 0.0
        %299 = vmatpush1.msra.mxu0 0.0
        %300 = vmatprep.subr.mxu0 0.0
        %301 = vmatpush1.msra.mxu0 0.0
        %302 = vmatprep.subr.mxu0 0.0
        %303 = vmatpush1.msra.mxu0 0.0
        %304 = vmatprep.mubr.f32.mxu0 0.0
        %305 = vmatmul.mubr.f32.gmra.mrb[0].mxu0 %v229
        %v306 = vpop.f32.mrb[0].mxu0
        %v307 = vadd.f32 0.0, %v306
        %v308 = vpop.f32.mrb[0].mxu0
        %309 = vmatprep.mubr.f32.mxu0 0.0
        %310 = vmatmul.mubr.f32.gmra.mrb[0].mxu0 %v232
        %v311 = vpop.f32.mrb[0].mxu0
        %v312 = vadd.f32 0.0, %v311
        %v313 = vpop.f32.mrb[0].mxu0
        %314 = vmatprep.mubr.f32.mxu0 0.0
        %315 = vmatmul.mubr.f32.gmra.mrb[0].mxu0 %v235
        %v316 = vpop.f32.mrb[0].mxu0
        %v317 = vadd.f32 0.0, %v316
        %v318 = vpop.f32.mrb[0].mxu0
        %319 = vmatprep.mubr.f32.mxu0 0.0
        %320 = vmatmul.mubr.f32.gmra.mrb[0].mxu0 %v238
        %v321 = vpop.f32.mrb[0].mxu0
        %v322 = vadd.f32 0.0, %v321
        %v323 = vpop.f32.mrb[0].mxu0
        %324 = vdwg.mxu0
        %v326 = vsel %vm227, %v307, 0
        %v329 = vsel %vm227, %v312, 0
        %v332 = vsel %vm227, %v317, 0
        %v335 = vsel %vm227, %v322, 0
        %337 = vmatprep.subr.mxu0 0.0
        %338 = vmatpush1.msra.mxu0 %v223
        %339 = vmatprep.subr.mxu0 0.0
        %340 = vmatpush1.msra.mxu0 %v224
        %341 = vmatprep.subr.mxu0 0.0
        %342 = vmatpush1.msra.mxu0 0.0
        %343 = vmatprep.subr.mxu0 0.0
        %344 = vmatpush1.msra.mxu0 0.0
        %345 = vmatprep.subr.mxu0 0.0
        %346 = vmatpush1.msra.mxu0 0.0
        %347 = vmatprep.subr.mxu0 0.0
        %348 = vmatpush1.msra.mxu0 0.0
        %349 = vmatprep.subr.mxu0 0.0
        %350 = vmatpush1.msra.mxu0 0.0
        %351 = vmatprep.subr.mxu0 0.0
        %352 = vmatpush1.msra.mxu0 0.0
        %353 = vmatprep.subr.mxu0 0.0
        %354 = vmatpush1.msra.mxu0 0.0
        %355 = vmatprep.subr.mxu0 0.0
        %356 = vmatpush1.msra.mxu0 0.0
        %357 = vmatprep.subr.mxu0 0.0
        %358 = vmatpush1.msra.mxu0 0.0
        %359 = vmatprep.subr.mxu0 0.0
        %360 = vmatpush1.msra.mxu0 0.0
        %361 = vmatprep.subr.mxu0 0.0
        %362 = vmatpush1.msra.mxu0 0.0
        %363 = vmatprep.subr.mxu0 0.0
        %364 = vmatpush1.msra.mxu0 0.0
        %365 = vmatprep.subr.mxu0 0.0
        %366 = vmatpush1.msra.mxu0 0.0
        %367 = vmatprep.subr.mxu0 0.0
        %368 = vmatpush1.msra.mxu0 0.0
        %369 = vmatprep.subr.mxu0 0.0
        %370 = vmatpush1.msra.mxu0 0.0
        %371 = vmatprep.subr.mxu0 0.0
        %372 = vmatpush1.msra.mxu0 0.0
        %373 = vmatprep.subr.mxu0 0.0
        %374 = vmatpush1.msra.mxu0 0.0
        %375 = vmatprep.subr.mxu0 0.0
        %376 = vmatpush1.msra.mxu0 0.0
        %377 = vmatprep.subr.mxu0 0.0
        %378 = vmatpush1.msra.mxu0 0.0
        %379 = vmatprep.subr.mxu0 0.0
        %380 = vmatpush1.msra.mxu0 0.0
        %381 = vmatprep.subr.mxu0 0.0
        %382 = vmatpush1.msra.mxu0 0.0
        %383 = vmatprep.subr.mxu0 0.0
        %384 = vmatpush1.msra.mxu0 0.0
        %385 = vmatprep.subr.mxu0 0.0
        %386 = vmatpush1.msra.mxu0 0.0
        %387 = vmatprep.subr.mxu0 0.0
        %388 = vmatpush1.msra.mxu0 0.0
        %389 = vmatprep.subr.mxu0 0.0
        %390 = vmatpush1.msra.mxu0 0.0
        %391 = vmatprep.subr.mxu0 0.0
        %392 = vmatpush1.msra.mxu0 0.0
        %393 = vmatprep.subr.mxu0 0.0
        %394 = vmatpush1.msra.mxu0 0.0
        %395 = vmatprep.subr.mxu0 0.0
        %396 = vmatpush1.msra.mxu0 0.0
        %397 = vmatprep.subr.mxu0 0.0
        %398 = vmatpush1.msra.mxu0 0.0
        %399 = vmatprep.subr.mxu0 0.0
        %400 = vmatpush1.msra.mxu0 0.0
        %401 = vmatprep.mubr.f32.mxu0 0.0
        %402 = vmatmul.mubr.f32.gmra.mrb[0].mxu0 %v326
        %v403 = vpop.f32.mrb[0].mxu0
        %v404 = vadd.f32 0.0, %v403
        %v405 = vpop.f32.mrb[0].mxu0
        %406 = vmatprep.mubr.f32.mxu0 0.0
        %407 = vmatmul.mubr.f32.gmra.mrb[0].mxu0 %v329
        %v408 = vpop.f32.mrb[0].mxu0
        %v409 = vadd.f32 0.0, %v408
        %v410 = vpop.f32.mrb[0].mxu0
        %411 = vmatprep.mubr.f32.mxu0 0.0
        %412 = vmatmul.mubr.f32.gmra.mrb[0].mxu0 %v332
        %v413 = vpop.f32.mrb[0].mxu0
        %v414 = vadd.f32 0.0, %v413
        %v415 = vpop.f32.mrb[0].mxu0
        %416 = vmatprep.mubr.f32.mxu0 0.0
        %417 = vmatmul.mubr.f32.gmra.mrb[0].mxu0 %v335
        %v418 = vpop.f32.mrb[0].mxu0
        %v419 = vadd.f32 0.0, %v418
        %v420 = vpop.f32.mrb[0].mxu0
        %421 = vdwg.mxu0
        %vm422 = vcmask 261120
        %423 = vst.msk [vmem:[%s216] sm:$0xff] %vm422, %v404
        %424 = vst.msk [vmem:[%s216 + $0x8] sm:$0xff] %vm422, %v409
        %425 = vst.msk [vmem:[%s216 + $0x10] sm:$0xff] %vm422, %v414
        %426 = vst.msk [vmem:[%s216 + $0x18] sm:$0xff] %vm422, %v419
        %s427 = scalar_lea.vmem %s194, 16 [#allocation7]
        %v428 = vld [vmem:[%s427] sm:$0xff]
        %v429 = vld [vmem:[%s427 + $0x8] sm:$0xff]
        %430 = vmatprep.subr.mxu0 0.0
        %431 = vmatpush1.msra.mxu0 %v428
        %432 = vmatprep.subr.mxu0 0.0
        %433 = vmatpush1.msra.mxu0 %v429
        %434 = vmatprep.subr.mxu0 0.0
        %435 = vmatpush1.msra.mxu0 0.0
        %436 = vmatprep.subr.mxu0 0.0
        %437 = vmatpush1.msra.mxu0 0.0
        %438 = vmatprep.subr.mxu0 0.0
        %439 = vmatpush1.msra.mxu0 0.0
        %440 = vmatprep.subr.mxu0 0.0
        %441 = vmatpush1.msra.mxu0 0.0
        %442 = vmatprep.subr.mxu0 0.0
        %443 = vmatpush1.msra.mxu0 0.0
        %444 = vmatprep.subr.mxu0 0.0
        %445 = vmatpush1.msra.mxu0 0.0
        %446 = vmatprep.subr.mxu0 0.0
        %447 = vmatpush1.msra.mxu0 0.0
        %448 = vmatprep.subr.mxu0 0.0
        %449 = vmatpush1.msra.mxu0 0.0
        %450 = vmatprep.subr.mxu0 0.0
        %451 = vmatpush1.msra.mxu0 0.0
        %452 = vmatprep.subr.mxu0 0.0
        %453 = vmatpush1.msra.mxu0 0.0
        %454 = vmatprep.subr.mxu0 0.0
        %455 = vmatpush1.msra.mxu0 0.0
        %456 = vmatprep.subr.mxu0 0.0
        %457 = vmatpush1.msra.mxu0 0.0
        %458 = vmatprep.subr.mxu0 0.0
        %459 = vmatpush1.msra.mxu0 0.0
        %460 = vmatprep.subr.mxu0 0.0
        %461 = vmatpush1.msra.mxu0 0.0
        %462 = vmatprep.subr.mxu0 0.0
        %463 = vmatpush1.msra.mxu0 0.0
        %464 = vmatprep.subr.mxu0 0.0
        %465 = vmatpush1.msra.mxu0 0.0
        %466 = vmatprep.subr.mxu0 0.0
        %467 = vmatpush1.msra.mxu0 0.0
        %468 = vmatprep.subr.mxu0 0.0
        %469 = vmatpush1.msra.mxu0 0.0
        %470 = vmatprep.subr.mxu0 0.0
        %471 = vmatpush1.msra.mxu0 0.0
        %472 = vmatprep.subr.mxu0 0.0
        %473 = vmatpush1.msra.mxu0 0.0
        %474 = vmatprep.subr.mxu0 0.0
        %475 = vmatpush1.msra.mxu0 0.0
        %476 = vmatprep.subr.mxu0 0.0
        %477 = vmatpush1.msra.mxu0 0.0
        %478 = vmatprep.subr.mxu0 0.0
        %479 = vmatpush1.msra.mxu0 0.0
        %480 = vmatprep.subr.mxu0 0.0
        %481 = vmatpush1.msra.mxu0 0.0
        %482 = vmatprep.subr.mxu0 0.0
        %483 = vmatpush1.msra.mxu0 0.0
        %484 = vmatprep.subr.mxu0 0.0
        %485 = vmatpush1.msra.mxu0 0.0
        %486 = vmatprep.subr.mxu0 0.0
        %487 = vmatpush1.msra.mxu0 0.0
        %488 = vmatprep.subr.mxu0 0.0
        %489 = vmatpush1.msra.mxu0 0.0
        %490 = vmatprep.subr.mxu0 0.0
        %491 = vmatpush1.msra.mxu0 0.0
        %492 = vmatprep.subr.mxu0 0.0
        %493 = vmatpush1.msra.mxu0 0.0
        %494 = vmatprep.mubr.f32.mxu0 0.0
        %495 = vmatmul.mubr.f32.gmra.mrb[0].mxu0 %v229
        %v496 = vpop.f32.mrb[0].mxu0
        %v497 = vadd.f32 0.0, %v496
        %v498 = vpop.f32.mrb[0].mxu0
        %499 = vmatprep.mubr.f32.mxu0 0.0
        %500 = vmatmul.mubr.f32.gmra.mrb[0].mxu0 %v232
        %v501 = vpop.f32.mrb[0].mxu0
        %v502 = vadd.f32 0.0, %v501
        %v503 = vpop.f32.mrb[0].mxu0
        %504 = vmatprep.mubr.f32.mxu0 0.0
        %505 = vmatmul.mubr.f32.gmra.mrb[0].mxu0 %v235
        %v506 = vpop.f32.mrb[0].mxu0
        %v507 = vadd.f32 0.0, %v506
        %v508 = vpop.f32.mrb[0].mxu0
        %509 = vmatprep.mubr.f32.mxu0 0.0
        %510 = vmatmul.mubr.f32.gmra.mrb[0].mxu0 %v238
        %v511 = vpop.f32.mrb[0].mxu0
        %v512 = vadd.f32 0.0, %v511
        %v513 = vpop.f32.mrb[0].mxu0
        %514 = vdwg.mxu0
        %v516 = vsel %vm227, %v497, 0
        %v519 = vsel %vm227, %v502, 0
        %v522 = vsel %vm227, %v507, 0
        %v525 = vsel %vm227, %v512, 0
        %527 = vmatprep.subr.mxu0 0.0
        %528 = vmatpush1.msra.mxu0 %v223
        %529 = vmatprep.subr.mxu0 0.0
        %530 = vmatpush1.msra.mxu0 %v224
        %531 = vmatprep.subr.mxu0 0.0
        %532 = vmatpush1.msra.mxu0 0.0
        %533 = vmatprep.subr.mxu0 0.0
        %534 = vmatpush1.msra.mxu0 0.0
        %535 = vmatprep.subr.mxu0 0.0
        %536 = vmatpush1.msra.mxu0 0.0
        %537 = vmatprep.subr.mxu0 0.0
        %538 = vmatpush1.msra.mxu0 0.0
        %539 = vmatprep.subr.mxu0 0.0
        %540 = vmatpush1.msra.mxu0 0.0
        %541 = vmatprep.subr.mxu0 0.0
        %542 = vmatpush1.msra.mxu0 0.0
        %543 = vmatprep.subr.mxu0 0.0
        %544 = vmatpush1.msra.mxu0 0.0
        %545 = vmatprep.subr.mxu0 0.0
        %546 = vmatpush1.msra.mxu0 0.0
        %547 = vmatprep.subr.mxu0 0.0
        %548 = vmatpush1.msra.mxu0 0.0
        %549 = vmatprep.subr.mxu0 0.0
        %550 = vmatpush1.msra.mxu0 0.0
        %551 = vmatprep.subr.mxu0 0.0
        %552 = vmatpush1.msra.mxu0 0.0
        %553 = vmatprep.subr.mxu0 0.0
        %554 = vmatpush1.msra.mxu0 0.0
        %555 = vmatprep.subr.mxu0 0.0
        %556 = vmatpush1.msra.mxu0 0.0
        %557 = vmatprep.subr.mxu0 0.0
        %558 = vmatpush1.msra.mxu0 0.0
        %559 = vmatprep.subr.mxu0 0.0
        %560 = vmatpush1.msra.mxu0 0.0
        %561 = vmatprep.subr.mxu0 0.0
        %562 = vmatpush1.msra.mxu0 0.0
        %563 = vmatprep.subr.mxu0 0.0
        %564 = vmatpush1.msra.mxu0 0.0
        %565 = vmatprep.subr.mxu0 0.0
        %566 = vmatpush1.msra.mxu0 0.0
        %567 = vmatprep.subr.mxu0 0.0
        %568 = vmatpush1.msra.mxu0 0.0
        %569 = vmatprep.subr.mxu0 0.0
        %570 = vmatpush1.msra.mxu0 0.0
        %571 = vmatprep.subr.mxu0 0.0
        %572 = vmatpush1.msra.mxu0 0.0
        %573 = vmatprep.subr.mxu0 0.0
        %574 = vmatpush1.msra.mxu0 0.0
        %575 = vmatprep.subr.mxu0 0.0
        %576 = vmatpush1.msra.mxu0 0.0
        %577 = vmatprep.subr.mxu0 0.0
        %578 = vmatpush1.msra.mxu0 0.0
        %579 = vmatprep.subr.mxu0 0.0
        %580 = vmatpush1.msra.mxu0 0.0
        %581 = vmatprep.subr.mxu0 0.0
        %582 = vmatpush1.msra.mxu0 0.0
        %583 = vmatprep.subr.mxu0 0.0
        %584 = vmatpush1.msra.mxu0 0.0
        %585 = vmatprep.subr.mxu0 0.0
        %586 = vmatpush1.msra.mxu0 0.0
        %587 = vmatprep.subr.mxu0 0.0
        %588 = vmatpush1.msra.mxu0 0.0
        %589 = vmatprep.subr.mxu0 0.0
        %590 = vmatpush1.msra.mxu0 0.0
        %591 = vmatprep.mubr.f32.mxu0 0.0
        %592 = vmatmul.mubr.f32.gmra.mrb[0].mxu0 %v516
        %v593 = vpop.f32.mrb[0].mxu0
        %v594 = vadd.f32 0.0, %v593
        %v595 = vpop.f32.mrb[0].mxu0
        %596 = vmatprep.mubr.f32.mxu0 0.0
        %597 = vmatmul.mubr.f32.gmra.mrb[0].mxu0 %v519
        %v598 = vpop.f32.mrb[0].mxu0
        %v599 = vadd.f32 0.0, %v598
        %v600 = vpop.f32.mrb[0].mxu0
        %601 = vmatprep.mubr.f32.mxu0 0.0
        %602 = vmatmul.mubr.f32.gmra.mrb[0].mxu0 %v522
        %v603 = vpop.f32.mrb[0].mxu0
        %v604 = vadd.f32 0.0, %v603
        %v605 = vpop.f32.mrb[0].mxu0
        %606 = vmatprep.mubr.f32.mxu0 0.0
        %607 = vmatmul.mubr.f32.gmra.mrb[0].mxu0 %v525
        %v608 = vpop.f32.mrb[0].mxu0
        %v609 = vadd.f32 0.0, %v608
        %v610 = vpop.f32.mrb[0].mxu0
        %611 = vdwg.mxu0
        %s612 = scalar_lea.vmem %s216, 32 [#allocation8]
        %613 = vst.msk [vmem:[%s612] sm:$0xff] %vm422, %v594
        %614 = vst.msk [vmem:[%s612 + $0x8] sm:$0xff] %vm422, %v599
        %615 = vst.msk [vmem:[%s612 + $0x10] sm:$0xff] %vm422, %v604
        %616 = vst.msk [vmem:[%s612 + $0x18] sm:$0xff] %vm422, %v609
        %s617 = scalar_lea.vmem %s194, 32 [#allocation7]
        %v618 = vld [vmem:[%s617] sm:$0xff]
        %v619 = vld [vmem:[%s617 + $0x8] sm:$0xff]
        %620 = vmatprep.subr.mxu0 0.0
        %621 = vmatpush1.msra.mxu0 %v618
        %622 = vmatprep.subr.mxu0 0.0
        %623 = vmatpush1.msra.mxu0 %v619
        %624 = vmatprep.subr.mxu0 0.0
        %625 = vmatpush1.msra.mxu0 0.0
        %626 = vmatprep.subr.mxu0 0.0
        %627 = vmatpush1.msra.mxu0 0.0
        %628 = vmatprep.subr.mxu0 0.0
        %629 = vmatpush1.msra.mxu0 0.0
        %630 = vmatprep.subr.mxu0 0.0
        %631 = vmatpush1.msra.mxu0 0.0
        %632 = vmatprep.subr.mxu0 0.0
        %633 = vmatpush1.msra.mxu0 0.0
        %634 = vmatprep.subr.mxu0 0.0
        %635 = vmatpush1.msra.mxu0 0.0
        %636 = vmatprep.subr.mxu0 0.0
        %637 = vmatpush1.msra.mxu0 0.0
        %638 = vmatprep.subr.mxu0 0.0
        %639 = vmatpush1.msra.mxu0 0.0
        %640 = vmatprep.subr.mxu0 0.0
        %641 = vmatpush1.msra.mxu0 0.0
        %642 = vmatprep.subr.mxu0 0.0
        %643 = vmatpush1.msra.mxu0 0.0
        %644 = vmatprep.subr.mxu0 0.0
        %645 = vmatpush1.msra.mxu0 0.0
        %646 = vmatprep.subr.mxu0 0.0
        %647 = vmatpush1.msra.mxu0 0.0
        %648 = vmatprep.subr.mxu0 0.0
        %649 = vmatpush1.msra.mxu0 0.0
        %650 = vmatprep.subr.mxu0 0.0
        %651 = vmatpush1.msra.mxu0 0.0
        %652 = vmatprep.subr.mxu0 0.0
        %653 = vmatpush1.msra.mxu0 0.0
        %654 = vmatprep.subr.mxu0 0.0
        %655 = vmatpush1.msra.mxu0 0.0
        %656 = vmatprep.subr.mxu0 0.0
        %657 = vmatpush1.msra.mxu0 0.0
        %658 = vmatprep.subr.mxu0 0.0
        %659 = vmatpush1.msra.mxu0 0.0
        %660 = vmatprep.subr.mxu0 0.0
        %661 = vmatpush1.msra.mxu0 0.0
        %662 = vmatprep.subr.mxu0 0.0
        %663 = vmatpush1.msra.mxu0 0.0
        %664 = vmatprep.subr.mxu0 0.0
        %665 = vmatpush1.msra.mxu0 0.0
        %666 = vmatprep.subr.mxu0 0.0
        %667 = vmatpush1.msra.mxu0 0.0
        %668 = vmatprep.subr.mxu0 0.0
        %669 = vmatpush1.msra.mxu0 0.0
        %670 = vmatprep.subr.mxu0 0.0
        %671 = vmatpush1.msra.mxu0 0.0
        %672 = vmatprep.subr.mxu0 0.0
        %673 = vmatpush1.msra.mxu0 0.0
        %674 = vmatprep.subr.mxu0 0.0
        %675 = vmatpush1.msra.mxu0 0.0
        %676 = vmatprep.subr.mxu0 0.0
        %677 = vmatpush1.msra.mxu0 0.0
        %678 = vmatprep.subr.mxu0 0.0
        %679 = vmatpush1.msra.mxu0 0.0
        %680 = vmatprep.subr.mxu0 0.0
        %681 = vmatpush1.msra.mxu0 0.0
        %682 = vmatprep.subr.mxu0 0.0
        %683 = vmatpush1.msra.mxu0 0.0
        %684 = vmatprep.mubr.f32.mxu0 0.0
        %685 = vmatmul.mubr.f32.gmra.mrb[0].mxu0 %v229
        %v686 = vpop.f32.mrb[0].mxu0
        %v687 = vadd.f32 0.0, %v686
        %v688 = vpop.f32.mrb[0].mxu0
        %689 = vmatprep.mubr.f32.mxu0 0.0
        %690 = vmatmul.mubr.f32.gmra.mrb[0].mxu0 %v232
        %v691 = vpop.f32.mrb[0].mxu0
        %v692 = vadd.f32 0.0, %v691
        %v693 = vpop.f32.mrb[0].mxu0
        %694 = vmatprep.mubr.f32.mxu0 0.0
        %695 = vmatmul.mubr.f32.gmra.mrb[0].mxu0 %v235
        %v696 = vpop.f32.mrb[0].mxu0
        %v697 = vadd.f32 0.0, %v696
        %v698 = vpop.f32.mrb[0].mxu0
        %699 = vmatprep.mubr.f32.mxu0 0.0
        %700 = vmatmul.mubr.f32.gmra.mrb[0].mxu0 %v238
        %v701 = vpop.f32.mrb[0].mxu0
        %v702 = vadd.f32 0.0, %v701
        %v703 = vpop.f32.mrb[0].mxu0
        %704 = vdwg.mxu0
        %v706 = vsel %vm227, %v687, 0
        %v709 = vsel %vm227, %v692, 0
        %v712 = vsel %vm227, %v697, 0
        %v715 = vsel %vm227, %v702, 0
        %717 = vmatprep.subr.mxu0 0.0
        %718 = vmatpush1.msra.mxu0 %v223
        %719 = vmatprep.subr.mxu0 0.0
        %720 = vmatpush1.msra.mxu0 %v224
        %721 = vmatprep.subr.mxu0 0.0
        %722 = vmatpush1.msra.mxu0 0.0
        %723 = vmatprep.subr.mxu0 0.0
        %724 = vmatpush1.msra.mxu0 0.0
        %725 = vmatprep.subr.mxu0 0.0
        %726 = vmatpush1.msra.mxu0 0.0
        %727 = vmatprep.subr.mxu0 0.0
        %728 = vmatpush1.msra.mxu0 0.0
        %729 = vmatprep.subr.mxu0 0.0
        %730 = vmatpush1.msra.mxu0 0.0
        %731 = vmatprep.subr.mxu0 0.0
        %732 = vmatpush1.msra.mxu0 0.0
        %733 = vmatprep.subr.mxu0 0.0
        %734 = vmatpush1.msra.mxu0 0.0
        %735 = vmatprep.subr.mxu0 0.0
        %736 = vmatpush1.msra.mxu0 0.0
        %737 = vmatprep.subr.mxu0 0.0
        %738 = vmatpush1.msra.mxu0 0.0
        %739 = vmatprep.subr.mxu0 0.0
        %740 = vmatpush1.msra.mxu0 0.0
        %741 = vmatprep.subr.mxu0 0.0
        %742 = vmatpush1.msra.mxu0 0.0
        %743 = vmatprep.subr.mxu0 0.0
        %744 = vmatpush1.msra.mxu0 0.0
        %745 = vmatprep.subr.mxu0 0.0
        %746 = vmatpush1.msra.mxu0 0.0
        %747 = vmatprep.subr.mxu0 0.0
        %748 = vmatpush1.msra.mxu0 0.0
        %749 = vmatprep.subr.mxu0 0.0
        %750 = vmatpush1.msra.mxu0 0.0
        %751 = vmatprep.subr.mxu0 0.0
        %752 = vmatpush1.msra.mxu0 0.0
        %753 = vmatprep.subr.mxu0 0.0
        %754 = vmatpush1.msra.mxu0 0.0
        %755 = vmatprep.subr.mxu0 0.0
        %756 = vmatpush1.msra.mxu0 0.0
        %757 = vmatprep.subr.mxu0 0.0
        %758 = vmatpush1.msra.mxu0 0.0
        %759 = vmatprep.subr.mxu0 0.0
        %760 = vmatpush1.msra.mxu0 0.0
        %761 = vmatprep.subr.mxu0 0.0
        %762 = vmatpush1.msra.mxu0 0.0
        %763 = vmatprep.subr.mxu0 0.0
        %764 = vmatpush1.msra.mxu0 0.0
        %765 = vmatprep.subr.mxu0 0.0
        %766 = vmatpush1.msra.mxu0 0.0
        %767 = vmatprep.subr.mxu0 0.0
        %768 = vmatpush1.msra.mxu0 0.0
        %769 = vmatprep.subr.mxu0 0.0
        %770 = vmatpush1.msra.mxu0 0.0
        %771 = vmatprep.subr.mxu0 0.0
        %772 = vmatpush1.msra.mxu0 0.0
        %773 = vmatprep.subr.mxu0 0.0
        %774 = vmatpush1.msra.mxu0 0.0
        %775 = vmatprep.subr.mxu0 0.0
        %776 = vmatpush1.msra.mxu0 0.0
        %777 = vmatprep.subr.mxu0 0.0
        %778 = vmatpush1.msra.mxu0 0.0
        %779 = vmatprep.subr.mxu0 0.0
        %780 = vmatpush1.msra.mxu0 0.0
        %781 = vmatprep.mubr.f32.mxu0 0.0
        %782 = vmatmul.mubr.f32.gmra.mrb[0].mxu0 %v706
        %v783 = vpop.f32.mrb[0].mxu0
        %v784 = vadd.f32 0.0, %v783
        %v785 = vpop.f32.mrb[0].mxu0
        %786 = vmatprep.mubr.f32.mxu0 0.0
        %787 = vmatmul.mubr.f32.gmra.mrb[0].mxu0 %v709
        %v788 = vpop.f32.mrb[0].mxu0
        %v789 = vadd.f32 0.0, %v788
        %v790 = vpop.f32.mrb[0].mxu0
        %791 = vmatprep.mubr.f32.mxu0 0.0
        %792 = vmatmul.mubr.f32.gmra.mrb[0].mxu0 %v712
        %v793 = vpop.f32.mrb[0].mxu0
        %v794 = vadd.f32 0.0, %v793
        %v795 = vpop.f32.mrb[0].mxu0
        %796 = vmatprep.mubr.f32.mxu0 0.0
        %797 = vmatmul.mubr.f32.gmra.mrb[0].mxu0 %v715
        %v798 = vpop.f32.mrb[0].mxu0
        %v799 = vadd.f32 0.0, %v798
        %v800 = vpop.f32.mrb[0].mxu0
        %801 = vdwg.mxu0
        %s802 = scalar_lea.vmem %s216, 64 [#allocation8]
        %803 = vst.msk [vmem:[%s802] sm:$0xff] %vm422, %v784
        %804 = vst.msk [vmem:[%s802 + $0x8] sm:$0xff] %vm422, %v789
        %805 = vst.msk [vmem:[%s802 + $0x10] sm:$0xff] %vm422, %v794
        %806 = vst.msk [vmem:[%s802 + $0x18] sm:$0xff] %vm422, %v799
        %s807 = scalar_lea.vmem %s194, 48 [#allocation7]
        %v808 = vld [vmem:[%s807] sm:$0xff]
        %v809 = vld [vmem:[%s807 + $0x8] sm:$0xff]
        %810 = vmatprep.subr.mxu0 0.0
        %811 = vmatpush1.msra.mxu0 %v808
        %812 = vmatprep.subr.mxu0 0.0
        %813 = vmatpush1.msra.mxu0 %v809
        %814 = vmatprep.subr.mxu0 0.0
        %815 = vmatpush1.msra.mxu0 0.0
        %816 = vmatprep.subr.mxu0 0.0
        %817 = vmatpush1.msra.mxu0 0.0
        %818 = vmatprep.subr.mxu0 0.0
        %819 = vmatpush1.msra.mxu0 0.0
        %820 = vmatprep.subr.mxu0 0.0
        %821 = vmatpush1.msra.mxu0 0.0
        %822 = vmatprep.subr.mxu0 0.0
        %823 = vmatpush1.msra.mxu0 0.0
        %824 = vmatprep.subr.mxu0 0.0
        %825 = vmatpush1.msra.mxu0 0.0
        %826 = vmatprep.subr.mxu0 0.0
        %827 = vmatpush1.msra.mxu0 0.0
        %828 = vmatprep.subr.mxu0 0.0
        %829 = vmatpush1.msra.mxu0 0.0
        %830 = vmatprep.subr.mxu0 0.0
        %831 = vmatpush1.msra.mxu0 0.0
        %832 = vmatprep.subr.mxu0 0.0
        %833 = vmatpush1.msra.mxu0 0.0
        %834 = vmatprep.subr.mxu0 0.0
        %835 = vmatpush1.msra.mxu0 0.0
        %836 = vmatprep.subr.mxu0 0.0
        %837 = vmatpush1.msra.mxu0 0.0
        %838 = vmatprep.subr.mxu0 0.0
        %839 = vmatpush1.msra.mxu0 0.0
        %840 = vmatprep.subr.mxu0 0.0
        %841 = vmatpush1.msra.mxu0 0.0
        %842 = vmatprep.subr.mxu0 0.0
        %843 = vmatpush1.msra.mxu0 0.0
        %844 = vmatprep.subr.mxu0 0.0
        %845 = vmatpush1.msra.mxu0 0.0
        %846 = vmatprep.subr.mxu0 0.0
        %847 = vmatpush1.msra.mxu0 0.0
        %848 = vmatprep.subr.mxu0 0.0
        %849 = vmatpush1.msra.mxu0 0.0
        %850 = vmatprep.subr.mxu0 0.0
        %851 = vmatpush1.msra.mxu0 0.0
        %852 = vmatprep.subr.mxu0 0.0
        %853 = vmatpush1.msra.mxu0 0.0
        %854 = vmatprep.subr.mxu0 0.0
        %855 = vmatpush1.msra.mxu0 0.0
        %856 = vmatprep.subr.mxu0 0.0
        %857 = vmatpush1.msra.mxu0 0.0
        %858 = vmatprep.subr.mxu0 0.0
        %859 = vmatpush1.msra.mxu0 0.0
        %860 = vmatprep.subr.mxu0 0.0
        %861 = vmatpush1.msra.mxu0 0.0
        %862 = vmatprep.subr.mxu0 0.0
        %863 = vmatpush1.msra.mxu0 0.0
        %864 = vmatprep.subr.mxu0 0.0
        %865 = vmatpush1.msra.mxu0 0.0
        %866 = vmatprep.subr.mxu0 0.0
        %867 = vmatpush1.msra.mxu0 0.0
        %868 = vmatprep.subr.mxu0 0.0
        %869 = vmatpush1.msra.mxu0 0.0
        %870 = vmatprep.subr.mxu0 0.0
        %871 = vmatpush1.msra.mxu0 0.0
        %872 = vmatprep.subr.mxu0 0.0
        %873 = vmatpush1.msra.mxu0 0.0
        %874 = vmatprep.mubr.f32.mxu0 0.0
        %875 = vmatmul.mubr.f32.gmra.mrb[0].mxu0 %v229
        %v876 = vpop.f32.mrb[0].mxu0
        %v877 = vadd.f32 0.0, %v876
        %v878 = vpop.f32.mrb[0].mxu0
        %879 = vmatprep.mubr.f32.mxu0 0.0
        %880 = vmatmul.mubr.f32.gmra.mrb[0].mxu0 %v232
        %v881 = vpop.f32.mrb[0].mxu0
        %v882 = vadd.f32 0.0, %v881
        %v883 = vpop.f32.mrb[0].mxu0
        %884 = vmatprep.mubr.f32.mxu0 0.0
        %885 = vmatmul.mubr.f32.gmra.mrb[0].mxu0 %v235
        %v886 = vpop.f32.mrb[0].mxu0
        %v887 = vadd.f32 0.0, %v886
        %v888 = vpop.f32.mrb[0].mxu0
        %889 = vmatprep.mubr.f32.mxu0 0.0
        %890 = vmatmul.mubr.f32.gmra.mrb[0].mxu0 %v238
        %v891 = vpop.f32.mrb[0].mxu0
        %v892 = vadd.f32 0.0, %v891
        %v893 = vpop.f32.mrb[0].mxu0
        %894 = vdwg.mxu0
        %v896 = vsel %vm227, %v877, 0
        %v899 = vsel %vm227, %v882, 0
        %v902 = vsel %vm227, %v887, 0
        %v905 = vsel %vm227, %v892, 0
        %907 = vmatprep.subr.mxu0 0.0
        %908 = vmatpush1.msra.mxu0 %v223
        %909 = vmatprep.subr.mxu0 0.0
        %910 = vmatpush1.msra.mxu0 %v224
        %911 = vmatprep.subr.mxu0 0.0
        %912 = vmatpush1.msra.mxu0 0.0
        %913 = vmatprep.subr.mxu0 0.0
        %914 = vmatpush1.msra.mxu0 0.0
        %915 = vmatprep.subr.mxu0 0.0
        %916 = vmatpush1.msra.mxu0 0.0
        %917 = vmatprep.subr.mxu0 0.0
        %918 = vmatpush1.msra.mxu0 0.0
        %919 = vmatprep.subr.mxu0 0.0
        %920 = vmatpush1.msra.mxu0 0.0
        %921 = vmatprep.subr.mxu0 0.0
        %922 = vmatpush1.msra.mxu0 0.0
        %923 = vmatprep.subr.mxu0 0.0
        %924 = vmatpush1.msra.mxu0 0.0
        %925 = vmatprep.subr.mxu0 0.0
        %926 = vmatpush1.msra.mxu0 0.0
        %927 = vmatprep.subr.mxu0 0.0
        %928 = vmatpush1.msra.mxu0 0.0
        %929 = vmatprep.subr.mxu0 0.0
        %930 = vmatpush1.msra.mxu0 0.0
        %931 = vmatprep.subr.mxu0 0.0
        %932 = vmatpush1.msra.mxu0 0.0
        %933 = vmatprep.subr.mxu0 0.0
        %934 = vmatpush1.msra.mxu0 0.0
        %935 = vmatprep.subr.mxu0 0.0
        %936 = vmatpush1.msra.mxu0 0.0
        %937 = vmatprep.subr.mxu0 0.0
        %938 = vmatpush1.msra.mxu0 0.0
        %939 = vmatprep.subr.mxu0 0.0
        %940 = vmatpush1.msra.mxu0 0.0
        %941 = vmatprep.subr.mxu0 0.0
        %942 = vmatpush1.msra.mxu0 0.0
        %943 = vmatprep.subr.mxu0 0.0
        %944 = vmatpush1.msra.mxu0 0.0
        %945 = vmatprep.subr.mxu0 0.0
        %946 = vmatpush1.msra.mxu0 0.0
        %947 = vmatprep.subr.mxu0 0.0
        %948 = vmatpush1.msra.mxu0 0.0
        %949 = vmatprep.subr.mxu0 0.0
        %950 = vmatpush1.msra.mxu0 0.0
        %951 = vmatprep.subr.mxu0 0.0
        %952 = vmatpush1.msra.mxu0 0.0
        %953 = vmatprep.subr.mxu0 0.0
        %954 = vmatpush1.msra.mxu0 0.0
        %955 = vmatprep.subr.mxu0 0.0
        %956 = vmatpush1.msra.mxu0 0.0
        %957 = vmatprep.subr.mxu0 0.0
        %958 = vmatpush1.msra.mxu0 0.0
        %959 = vmatprep.subr.mxu0 0.0
        %960 = vmatpush1.msra.mxu0 0.0
        %961 = vmatprep.subr.mxu0 0.0
        %962 = vmatpush1.msra.mxu0 0.0
        %963 = vmatprep.subr.mxu0 0.0
        %964 = vmatpush1.msra.mxu0 0.0
        %965 = vmatprep.subr.mxu0 0.0
        %966 = vmatpush1.msra.mxu0 0.0
        %967 = vmatprep.subr.mxu0 0.0
        %968 = vmatpush1.msra.mxu0 0.0
        %969 = vmatprep.subr.mxu0 0.0
        %970 = vmatpush1.msra.mxu0 0.0
        %971 = vmatprep.mubr.f32.mxu0 0.0
        %972 = vmatmul.mubr.f32.gmra.mrb[0].mxu0 %v896
        %v973 = vpop.f32.mrb[0].mxu0
        %v974 = vadd.f32 0.0, %v973
        %v975 = vpop.f32.mrb[0].mxu0
        %976 = vmatprep.mubr.f32.mxu0 0.0
        %977 = vmatmul.mubr.f32.gmra.mrb[0].mxu0 %v899
        %v978 = vpop.f32.mrb[0].mxu0
        %v979 = vadd.f32 0.0, %v978
        %v980 = vpop.f32.mrb[0].mxu0
        %981 = vmatprep.mubr.f32.mxu0 0.0
        %982 = vmatmul.mubr.f32.gmra.mrb[0].mxu0 %v902
        %v983 = vpop.f32.mrb[0].mxu0
        %v984 = vadd.f32 0.0, %v983
        %v985 = vpop.f32.mrb[0].mxu0
        %986 = vmatprep.mubr.f32.mxu0 0.0
        %987 = vmatmul.mubr.f32.gmra.mrb[0].mxu0 %v905
        %v988 = vpop.f32.mrb[0].mxu0
        %v989 = vadd.f32 0.0, %v988
        %v990 = vpop.f32.mrb[0].mxu0
        %991 = vdwg.mxu0
        %s992 = scalar_lea.vmem %s216, 96 [#allocation8]
        %993 = vst.msk [vmem:[%s992] sm:$0xff] %vm422, %v974
        %994 = vst.msk [vmem:[%s992 + $0x8] sm:$0xff] %vm422, %v979
        %995 = vst.msk [vmem:[%s992 + $0x10] sm:$0xff] %vm422, %v984
        %996 = vst.msk [vmem:[%s992 + $0x18] sm:$0xff] %vm422, %v989
        %s997 = scalar_lea.vmem %s194, 64 [#allocation7]
        %v998 = vld [vmem:[%s997] sm:$0xff]
        %v999 = vld [vmem:[%s997 + $0x8] sm:$0xff]
        %1000 = vmatprep.subr.mxu0 0.0
        %1001 = vmatpush1.msra.mxu0 %v998
        %1002 = vmatprep.subr.mxu0 0.0
        %1003 = vmatpush1.msra.mxu0 %v999
        %1004 = vmatprep.subr.mxu0 0.0
        %1005 = vmatpush1.msra.mxu0 0.0
        %1006 = vmatprep.subr.mxu0 0.0
        %1007 = vmatpush1.msra.mxu0 0.0
        %1008 = vmatprep.subr.mxu0 0.0
        %1009 = vmatpush1.msra.mxu0 0.0
        %1010 = vmatprep.subr.mxu0 0.0
        %1011 = vmatpush1.msra.mxu0 0.0
        %1012 = vmatprep.subr.mxu0 0.0
        %1013 = vmatpush1.msra.mxu0 0.0
        %1014 = vmatprep.subr.mxu0 0.0
        %1015 = vmatpush1.msra.mxu0 0.0
        %1016 = vmatprep.subr.mxu0 0.0
        %1017 = vmatpush1.msra.mxu0 0.0
        %1018 = vmatprep.subr.mxu0 0.0
        %1019 = vmatpush1.msra.mxu0 0.0
        %1020 = vmatprep.subr.mxu0 0.0
        %1021 = vmatpush1.msra.mxu0 0.0
        %1022 = vmatprep.subr.mxu0 0.0
        %1023 = vmatpush1.msra.mxu0 0.0
        %1024 = vmatprep.subr.mxu0 0.0
        %1025 = vmatpush1.msra.mxu0 0.0
        %1026 = vmatprep.subr.mxu0 0.0
        %1027 = vmatpush1.msra.mxu0 0.0
        %1028 = vmatprep.subr.mxu0 0.0
        %1029 = vmatpush1.msra.mxu0 0.0
        %1030 = vmatprep.subr.mxu0 0.0
        %1031 = vmatpush1.msra.mxu0 0.0
        %1032 = vmatprep.subr.mxu0 0.0
        %1033 = vmatpush1.msra.mxu0 0.0
        %1034 = vmatprep.subr.mxu0 0.0
        %1035 = vmatpush1.msra.mxu0 0.0
        %1036 = vmatprep.subr.mxu0 0.0
        %1037 = vmatpush1.msra.mxu0 0.0
        %1038 = vmatprep.subr.mxu0 0.0
        %1039 = vmatpush1.msra.mxu0 0.0
        %1040 = vmatprep.subr.mxu0 0.0
        %1041 = vmatpush1.msra.mxu0 0.0
        %1042 = vmatprep.subr.mxu0 0.0
        %1043 = vmatpush1.msra.mxu0 0.0
        %1044 = vmatprep.subr.mxu0 0.0
        %1045 = vmatpush1.msra.mxu0 0.0
        %1046 = vmatprep.subr.mxu0 0.0
        %1047 = vmatpush1.msra.mxu0 0.0
        %1048 = vmatprep.subr.mxu0 0.0
        %1049 = vmatpush1.msra.mxu0 0.0
        %1050 = vmatprep.subr.mxu0 0.0
        %1051 = vmatpush1.msra.mxu0 0.0
        %1052 = vmatprep.subr.mxu0 0.0
        %1053 = vmatpush1.msra.mxu0 0.0
        %1054 = vmatprep.subr.mxu0 0.0
        %1055 = vmatpush1.msra.mxu0 0.0
        %1056 = vmatprep.subr.mxu0 0.0
        %1057 = vmatpush1.msra.mxu0 0.0
        %1058 = vmatprep.subr.mxu0 0.0
        %1059 = vmatpush1.msra.mxu0 0.0
        %1060 = vmatprep.subr.mxu0 0.0
        %1061 = vmatpush1.msra.mxu0 0.0
        %1062 = vmatprep.subr.mxu0 0.0
        %1063 = vmatpush1.msra.mxu0 0.0
        %1064 = vmatprep.mubr.f32.mxu0 0.0
        %1065 = vmatmul.mubr.f32.gmra.mrb[0].mxu0 %v229
        %v1066 = vpop.f32.mrb[0].mxu0
        %v1067 = vadd.f32 0.0, %v1066
        %v1068 = vpop.f32.mrb[0].mxu0
        %1069 = vmatprep.mubr.f32.mxu0 0.0
        %1070 = vmatmul.mubr.f32.gmra.mrb[0].mxu0 %v232
        %v1071 = vpop.f32.mrb[0].mxu0
        %v1072 = vadd.f32 0.0, %v1071
        %v1073 = vpop.f32.mrb[0].mxu0
        %1074 = vmatprep.mubr.f32.mxu0 0.0
        %1075 = vmatmul.mubr.f32.gmra.mrb[0].mxu0 %v235
        %v1076 = vpop.f32.mrb[0].mxu0
        %v1077 = vadd.f32 0.0, %v1076
        %v1078 = vpop.f32.mrb[0].mxu0
        %1079 = vmatprep.mubr.f32.mxu0 0.0
        %1080 = vmatmul.mubr.f32.gmra.mrb[0].mxu0 %v238
        %v1081 = vpop.f32.mrb[0].mxu0
        %v1082 = vadd.f32 0.0, %v1081
        %v1083 = vpop.f32.mrb[0].mxu0
        %1084 = vdwg.mxu0
        %v1086 = vsel %vm227, %v1067, 0
        %v1089 = vsel %vm227, %v1072, 0
        %v1092 = vsel %vm227, %v1077, 0
        %v1095 = vsel %vm227, %v1082, 0
        %1097 = vmatprep.subr.mxu0 0.0
        %1098 = vmatpush1.msra.mxu0 %v223
        %1099 = vmatprep.subr.mxu0 0.0
        %1100 = vmatpush1.msra.mxu0 %v224
        %1101 = vmatprep.subr.mxu0 0.0
        %1102 = vmatpush1.msra.mxu0 0.0
        %1103 = vmatprep.subr.mxu0 0.0
        %1104 = vmatpush1.msra.mxu0 0.0
        %1105 = vmatprep.subr.mxu0 0.0
        %1106 = vmatpush1.msra.mxu0 0.0
        %1107 = vmatprep.subr.mxu0 0.0
        %1108 = vmatpush1.msra.mxu0 0.0
        %1109 = vmatprep.subr.mxu0 0.0
        %1110 = vmatpush1.msra.mxu0 0.0
        %1111 = vmatprep.subr.mxu0 0.0
        %1112 = vmatpush1.msra.mxu0 0.0
        %1113 = vmatprep.subr.mxu0 0.0
        %1114 = vmatpush1.msra.mxu0 0.0
        %1115 = vmatprep.subr.mxu0 0.0
        %1116 = vmatpush1.msra.mxu0 0.0
        %1117 = vmatprep.subr.mxu0 0.0
        %1118 = vmatpush1.msra.mxu0 0.0
        %1119 = vmatprep.subr.mxu0 0.0
        %1120 = vmatpush1.msra.mxu0 0.0
        %1121 = vmatprep.subr.mxu0 0.0
        %1122 = vmatpush1.msra.mxu0 0.0
        %1123 = vmatprep.subr.mxu0 0.0
        %1124 = vmatpush1.msra.mxu0 0.0
        %1125 = vmatprep.subr.mxu0 0.0
        %1126 = vmatpush1.msra.mxu0 0.0
        %1127 = vmatprep.subr.mxu0 0.0
        %1128 = vmatpush1.msra.mxu0 0.0
        %1129 = vmatprep.subr.mxu0 0.0
        %1130 = vmatpush1.msra.mxu0 0.0
        %1131 = vmatprep.subr.mxu0 0.0
        %1132 = vmatpush1.msra.mxu0 0.0
        %1133 = vmatprep.subr.mxu0 0.0
        %1134 = vmatpush1.msra.mxu0 0.0
        %1135 = vmatprep.subr.mxu0 0.0
        %1136 = vmatpush1.msra.mxu0 0.0
        %1137 = vmatprep.subr.mxu0 0.0
        %1138 = vmatpush1.msra.mxu0 0.0
        %1139 = vmatprep.subr.mxu0 0.0
        %1140 = vmatpush1.msra.mxu0 0.0
        %1141 = vmatprep.subr.mxu0 0.0
        %1142 = vmatpush1.msra.mxu0 0.0
        %1143 = vmatprep.subr.mxu0 0.0
        %1144 = vmatpush1.msra.mxu0 0.0
        %1145 = vmatprep.subr.mxu0 0.0
        %1146 = vmatpush1.msra.mxu0 0.0
        %1147 = vmatprep.subr.mxu0 0.0
        %1148 = vmatpush1.msra.mxu0 0.0
        %1149 = vmatprep.subr.mxu0 0.0
        %1150 = vmatpush1.msra.mxu0 0.0
        %1151 = vmatprep.subr.mxu0 0.0
        %1152 = vmatpush1.msra.mxu0 0.0
        %1153 = vmatprep.subr.mxu0 0.0
        %1154 = vmatpush1.msra.mxu0 0.0
        %1155 = vmatprep.subr.mxu0 0.0
        %1156 = vmatpush1.msra.mxu0 0.0
        %1157 = vmatprep.subr.mxu0 0.0
        %1158 = vmatpush1.msra.mxu0 0.0
        %1159 = vmatprep.subr.mxu0 0.0
        %1160 = vmatpush1.msra.mxu0 0.0
        %1161 = vmatprep.mubr.f32.mxu0 0.0
        %1162 = vmatmul.mubr.f32.gmra.mrb[0].mxu0 %v1086
        %v1163 = vpop.f32.mrb[0].mxu0
        %v1164 = vadd.f32 0.0, %v1163
        %v1165 = vpop.f32.mrb[0].mxu0
        %1166 = vmatprep.mubr.f32.mxu0 0.0
        %1167 = vmatmul.mubr.f32.gmra.mrb[0].mxu0 %v1089
        %v1168 = vpop.f32.mrb[0].mxu0
        %v1169 = vadd.f32 0.0, %v1168
        %v1170 = vpop.f32.mrb[0].mxu0
        %1171 = vmatprep.mubr.f32.mxu0 0.0
        %1172 = vmatmul.mubr.f32.gmra.mrb[0].mxu0 %v1092
        %v1173 = vpop.f32.mrb[0].mxu0
        %v1174 = vadd.f32 0.0, %v1173
        %v1175 = vpop.f32.mrb[0].mxu0
        %1176 = vmatprep.mubr.f32.mxu0 0.0
        %1177 = vmatmul.mubr.f32.gmra.mrb[0].mxu0 %v1095
        %v1178 = vpop.f32.mrb[0].mxu0
        %v1179 = vadd.f32 0.0, %v1178
        %v1180 = vpop.f32.mrb[0].mxu0
        %1181 = vdwg.mxu0
        %s1182 = scalar_lea.vmem %s216, 128 [#allocation8]
        %1183 = vst.msk [vmem:[%s1182] sm:$0xff] %vm422, %v1164
        %1184 = vst.msk [vmem:[%s1182 + $0x8] sm:$0xff] %vm422, %v1169
        %1185 = vst.msk [vmem:[%s1182 + $0x10] sm:$0xff] %vm422, %v1174
        %1186 = vst.msk [vmem:[%s1182 + $0x18] sm:$0xff] %vm422, %v1179
        %s1187 = sand.u32 %s95, 1
        %s1188 = scalar_lea.sflag [#allocation4], %s1187
        %s1189 = sand.u32 %s95, 1
        %s1190 = smul.addr %s1189, 160
        %s1191 = scalar_lea.vmem [#allocation8], %s1190
        // Predicated region
        $region45: #{pallas_resize.1} parent=31 // pred_check
          %p1192 = pneg %p105
        $region46: #{pallas_resize.1} parent=31 // pred_check_branch
          %1194 = sbr.rel (%p1192) target = $region48
        $region47: #{pallas_resize.1} parent=31 // pred_region
          %s1195 = smul.u32 5, %s19
          %s1197 = ssub.s32 2560, 2560
          %1198 = vsyncadd %s1188, %s1197
          %s1199 = smul.addr %s1195, 4
          %s1200 = smul.addr %s1199, 128
          %s1201 = scalar_lea.hbm %s3, %s1200
          %s1202 = sshll.u32 %s1191, 4
          %s1203 = int_to_ptr.vmem [resolvable:$true] %s1202
          %1208 = dma.vmem_to_hbm [thread:$0]  %s1203, 2560, %s1201, %s1188, 128, 128, 8
        $region48: #{pallas_resize.1} parent=31 // pred_fallthru
          _
      $region32: #{pallas_resize.1} parent=5 // pred_fallthru
        _
      %p1209 = scmp.le.s32.totalorder 2, %s14
      // Predicated region
      $region49: #{pallas_resize.1} parent=5 // pred_check
        %p1210 = pneg %p1209
      $region50: #{pallas_resize.1} parent=5 // pred_check_branch
        %1212 = sbr.rel (%p1210) target = $region52
      $region51: #{pallas_resize.1} parent=5 // pred_region
        %s1213 = ssub.s32 %s14, 2
        // Predicated region
        $region53: #{pallas_resize.1} parent=51 // pred_check
          %p1214 = pneg %p111
        $region54: #{pallas_resize.1} parent=51 // pred_check_branch
          %1216 = sbr.rel (%p1214) target = $region56
        $region55: #{pallas_resize.1} parent=51 // pred_region
          %s1217 = sand.u32 %s96, 1
          %s1218 = scalar_lea.sflag [#allocation4], %s1217
          %s1219 = sand.u32 %s96, 1
          %s1220 = smul.addr %s1219, 160
          %s1221 = scalar_lea.vmem [#allocation8], %s1220
          %1222 = dma.done %s1218, 2560
        $region56: #{pallas_resize.1} parent=51 // pred_fallthru
          _
      $region52: #{pallas_resize.1} parent=5 // pred_fallthru
        _
    $region6: #{pallas_resize.1} parent=1 // loop_footer
      %s18 = sadd.s32 1, %s14
    $region7: #{pallas_resize.1} parent=1 // loop_footer_branch
      %13 = sbr.rel target = $region3
    $region8: #{pallas_resize.1} parent=1 // loop_exit
      _
    %1223 = vsyncpa [#allocation3], 1
    %s1224 = scalar_lea.sflag [#allocation3], 1
    %1225 = vsyncpa %s1224, 1
    %1226 = vsyncpa [#allocation6], 1
    %1227 = vsyncpa [#allocation4], 1
    %s1228 = scalar_lea.sflag [#allocation4], 1
    %1229 = vsyncpa %s1228, 1

</llo_original>
